<compile_context>
chip_gen: v6e
topology: v6e:2x2x1
jax: 0.10.0
libtpu: 0.0.40
codegen_flags: <defaults>
</compile_context>

<pallas_src>
from functools import partial

import numpy as np
import jax
import jax.numpy as jnp
from jax.experimental import pallas as pl
from jax.experimental.pallas import tpu as pltpu


# ----------------------------------------------------------------------------
# Host-side packing (done ONCE at model-load time, pure numpy / float64).
# ----------------------------------------------------------------------------
def adaptive_avg_pool1d_matrix(length: int, out_size: int) -> np.ndarray:
    """(L, S) matrix reproducing torch.nn.AdaptiveAvgPool1d exactly (ragged OK)."""
    P = np.zeros((length, out_size), dtype=np.float64)
    for j in range(out_size):
        start = (j * length) // out_size
        end = -((-(j + 1) * length) // out_size)   # ceil((j+1)*L/S)
        P[start:end, j] = 1.0 / float(end - start)
    return P


def pack_policy_params(params, length: int, out_width: int = 128):
    """Fold pooling + temp head + biases into two lane-friendly f32 slabs.

    slab1: (L+8, C1)  rows [0,L) = P @ [w1 | wt | -wt] (pooling folded in),
                      row  L    = [b1 | bt | -bt], remaining rows zero.
    slab2: (C1+8, OW) rows [0,H) = w2 into cols [0,A);
                      row  H    = +1 at col A, row H+1 = -1 at col A
                      (temp = relu(t) - relu(-t) = t, exact in f32);
                      row  C1   = [b2, 0, ...], remaining rows zero.
    """
    w1, b1, w2, b2, wt, bt = (np.asarray(p, dtype=np.float64) for p in params)
    s, hidden = w1.shape
    a = w2.shape[1]
    c1 = ((hidden + 2 + 7) // 8) * 8          # hidden cols + (t, -t), sublane aligned
    bt_val = float(bt.reshape(-1)[0])

    P = adaptive_avg_pool1d_matrix(length, s)                     # (L, S) float64

    wz = np.zeros((s, c1), dtype=np.float64)
    wz[:, :hidden] = w1
    wz[:, hidden] = wt[:, 0]
    wz[:, hidden + 1] = -wt[:, 0]

    slab1 = np.zeros((length + 8, c1), dtype=np.float64)
    slab1[:length] = P @ wz                                        # fold pooling
    slab1[length, :hidden] = b1.reshape(-1)
    slab1[length, hidden] = bt_val
    slab1[length, hidden + 1] = -bt_val

    slab2 = np.zeros((c1 + 8, out_width), dtype=np.float64)
    slab2[:hidden, :a] = w2
    slab2[hidden, a] = 1.0                                         # + relu(t)
    slab2[hidden + 1, a] = -1.0                                    # - relu(-t)
    slab2[c1, :a] = b2.reshape(-1)

    meta = dict(length=length, c1=c1, hidden=hidden, action_dim=a,
                out_width=out_width)
    return (jnp.asarray(slab1, dtype=jnp.float32),
            jnp.asarray(slab2, dtype=jnp.float32),
            meta)


# ----------------------------------------------------------------------------
# Kernel: zw = x @ slab1[:L] + slab1[L]  (pooling + layer1 + temp head, fused)
#         h  = relu(zw)
#         out = h @ slab2[:C1] + slab2[C1]  (lane-dense (bm, 128) slab)
# ----------------------------------------------------------------------------
def _policy_kernel(x_ref, wz_ref, w2_ref, out_ref, *, length, c1):
    x = x_ref[...]                                                 # (bm, L) lane-dense
    zw = jnp.dot(x, wz_ref[pl.ds(0, length), :],
                 preferred_element_type=jnp.float32)               # K = L on the MXU
    zw = zw + wz_ref[pl.ds(length, 1), :]                          # folded layer-1 bias
    h = jnp.maximum(zw, 0.0)                                       # single vmax; no mask
    out = jnp.dot(h, w2_ref[pl.ds(0, c1), :],
                  preferred_element_type=jnp.float32)
    out_ref[...] = out + w2_ref[pl.ds(c1, 1), :]                   # folded layer-2 bias


def _pick_bm(b: int) -> int:
    if b <= 16:
        return b
    # >= 2 grid steps so the "parallel" axis shards across v7x's 2 TensorCores;
    # 8-row aligned; capped at 256 rows (1 MiB x tile @ L=1024) so the double-
    # buffered working set fits v5e's 16 MiB default scoped VMEM with headroom.
    bm = ((pl.cdiv(b, 2) + 7) // 8) * 8
    return min(bm, 256)


@partial(jax.jit, static_argnames=("length", "c1", "action_dim", "out_width"))
def pooling_policy_packed(src, slab1, slab2, *, length, c1, action_dim, out_width):
    """src: (B, C, H, W) float32. Returns (actions (B, A), temp (B, 1))."""
    b = src.shape[0]
    x = src.reshape(b, length)                 # flatten(start_dim=1): metadata-only
    bm = _pick_bm(b)
    grid = (pl.cdiv(b, bm),)

    cost = pl.CostEstimate(
        flops=2 * b * length * c1 + 2 * b * c1 * out_width,
        transcendentals=0,
        bytes_accessed=4 * (b * length + slab1.size + slab2.size + b * out_width),
    )

    out = pl.pallas_call(
        partial(_policy_kernel, length=length, c1=c1),
        out_shape=jax.ShapeDtypeStruct((b, out_width), jnp.float32),
        grid_spec=pltpu.PrefetchScalarGridSpec(
            num_scalar_prefetch=0,
            grid=grid,
            in_specs=[
                pl.BlockSpec((bm, length), lambda i: (i, 0)),      # lane-dense x tile
                pl.BlockSpec(slab1.shape, lambda i: (0, 0)),       # grid-invariant slab
                pl.BlockSpec(slab2.shape, lambda i: (0, 0)),       # grid-invariant slab
            ],
            out_specs=pl.BlockSpec((bm, out_width), lambda i: (i, 0)),
        ),
        compiler_params=pltpu.CompilerParams(dimension_semantics=("parallel",)),
        cost_estimate=cost,
    )(x, slab1, slab2)

    actions = out[:, :action_dim]
    temp = out[:, action_dim:action_dim + 1]
    return actions, temp


# ----------------------------------------------------------------------------
# Pure-JAX reference of the PyTorch forward (unfolded, Precision.HIGHEST).
# ----------------------------------------------------------------------------
def reference(src, params, context_size: int):
    b = src.shape[0]
    x_flat = src.reshape(b, -1)
    l = x_flat.shape[1]
    P = jnp.asarray(adaptive_avg_pool1d_matrix(l, context_size).astype(np.float32))
    hi = jax.lax.Precision.HIGHEST
    z = jnp.dot(x_flat, P, precision=hi)
    w1, b1, w2, b2, wt, bt = params
    h = jnp.maximum(jnp.dot(z, w1, precision=hi) + b1, 0.0)
    actions = jnp.dot(h, w2, precision=hi) + b2
    temp = jnp.dot(z, wt, precision=hi) + bt
    return actions, temp


if __name__ == "__main__":
    # Small shapes consistent with the module:
    #   src: (B=2, C=4, H=16, W=16) -> flattened length L = 1024
    #   context_size S = 64, controller hidden H = 32, action dim A = 8
    B, C, Hs, Ws = 2, 4, 16, 16
    context_size, hidden, action_dim = 64, 32, 8
    L = C * Hs * Ws

    key = jax.random.PRNGKey(0)
    k_src, k_w1, k_b1, k_w2, k_b2, k_wt, k_bt = jax.random.split(key, 7)

    src = jax.random.normal(k_src, (B, C, Hs, Ws), dtype=jnp.float32)

    # controller = Sequential(Linear(S, hidden), ReLU(), Linear(hidden, action_dim))
    w1 = jax.random.normal(k_w1, (context_size, hidden), jnp.float32) * 0.05
    b1 = jax.random.normal(k_b1, (1, hidden), jnp.float32) * 0.05
    w2 = jax.random.normal(k_w2, (hidden, action_dim), jnp.float32) * 0.05
    b2 = jax.random.normal(k_b2, (1, action_dim), jnp.float32) * 0.05
    wt = jax.random.normal(k_wt, (context_size, 1), jnp.float32) * 0.05
    bt = jax.random.normal(k_bt, (1, 1), jnp.float32) * 0.05
    params = (w1, b1, w2, b2, wt, bt)

    # Pack ONCE at "model load" time (host-side numpy; out of the per-call path).
    slab1, slab2, meta = pack_policy_params(params, L)

    actions, temp = pooling_policy_packed(
        src, slab1, slab2,
        length=meta["length"], c1=meta["c1"],
        action_dim=meta["action_dim"], out_width=meta["out_width"])
    jax.block_until_ready((actions, temp))

    ref_actions, ref_temp = reference(src, params, context_size)
    np.testing.assert_allclose(np.asarray(actions), np.asarray(ref_actions),
                               rtol=1e-5, atol=1e-5)
    np.testing.assert_allclose(np.asarray(temp), np.asarray(ref_temp),
                               rtol=1e-5, atol=1e-5)

    assert actions.shape == (B, action_dim)
    assert temp.shape == (B, 1)
    print("KERNEL_OK")
</pallas_src>

<mosaic_0001>
module attributes {stable_mosaic.version = 11 : i64} {
  func.func @_policy_kernel(%arg0: i32, %arg1: memref<2x1024xf32, #tpu.memory_space<vmem>>, %arg2: memref<1032x40xf32, #tpu.memory_space<vmem>>, %arg3: memref<48x128xf32, #tpu.memory_space<vmem>>, %arg4: memref<2x128xf32, #tpu.memory_space<vmem>>) attributes {dimension_semantics = [#tpu.dimension_semantics<parallel>], iteration_bounds = array<i64: 1>, scalar_prefetch = 0 : i64, scratch_operands = 0 : i64, tpu.core_type = #tpu.core_type<tc>, window_params = [{transform_indices = @transform_0, window_bounds = array<i64: 2, 1024>}, {pipeline_mode = #tpu.pipeline_mode<synchronous>, transform_indices = @transform_1, window_bounds = array<i64: 1032, 40>}, {pipeline_mode = #tpu.pipeline_mode<synchronous>, transform_indices = @transform_2, window_bounds = array<i64: 48, 128>}, {transform_indices = @transform_3, window_bounds = array<i64: 2, 128>}]} {
    %c0 = arith.constant 0 : index
    %c0_0 = arith.constant 0 : index
    %0 = vector.load %arg1[%c0, %c0_0] : memref<2x1024xf32, #tpu.memory_space<vmem>>, vector<2x1024xf32>
    %c0_1 = arith.constant 0 : index
    %c0_2 = arith.constant 0 : index
    %1 = vector.load %arg2[%c0_1, %c0_2] : memref<1032x40xf32, #tpu.memory_space<vmem>>, vector<1024x40xf32>
    %cst = arith.constant dense<0.000000e+00> : vector<2x40xf32>
    %2 = tpu.matmul %0, %1, %cst {dimension_numbers = #tpu.dot_dimension_numbers<[1], [0], [0], [1], [0, 0, 1, 1], [], []>} : vector<2x1024xf32>, vector<1024x40xf32>, vector<2x40xf32> -> vector<2x40xf32>
    %c1024 = arith.constant 1024 : index
    %c0_3 = arith.constant 0 : index
    %3 = vector.load %arg2[%c1024, %c0_3] : memref<1032x40xf32, #tpu.memory_space<vmem>>, vector<1x40xf32>
    %4 = vector.broadcast %3 : vector<1x40xf32> to vector<2x40xf32>
    %5 = arith.addf %2, %4 : vector<2x40xf32>
    %cst_4 = arith.constant 0.000000e+00 : f32
    %6 = vector.broadcast %cst_4 : f32 to vector<2x40xf32>
    %7 = arith.maximumf %5, %6 : vector<2x40xf32>
    %c0_5 = arith.constant 0 : index
    %c0_6 = arith.constant 0 : index
    %8 = vector.load %arg3[%c0_5, %c0_6] : memref<48x128xf32, #tpu.memory_space<vmem>>, vector<40x128xf32>
    %cst_7 = arith.constant dense<0.000000e+00> : vector<2x128xf32>
    %9 = tpu.matmul %7, %8, %cst_7 {dimension_numbers = #tpu.dot_dimension_numbers<[1], [0], [0], [1], [0, 0, 1, 1], [], []>} : vector<2x40xf32>, vector<40x128xf32>, vector<2x128xf32> -> vector<2x128xf32>
    %c40 = arith.constant 40 : index
    %c0_8 = arith.constant 0 : index
    %10 = vector.load %arg3[%c40, %c0_8] : memref<48x128xf32, #tpu.memory_space<vmem>>, vector<1x128xf32>
    %11 = vector.broadcast %10 : vector<1x128xf32> to vector<2x128xf32>
    %12 = arith.addf %9, %11 : vector<2x128xf32>
    %c0_9 = arith.constant 0 : index
    %c0_10 = arith.constant 0 : index
    %13 = vector.load %arg4[%c0_9, %c0_10] : memref<2x128xf32, #tpu.memory_space<vmem>>, vector<2x128xf32>
    tpu.vector_store %arg4[%c0_9, %c0_10], %12 {strides = array<i32>} : memref<2x128xf32, #tpu.memory_space<vmem>>, vector<2x128xf32>,
    return
  }
  func.func @transform_0(%arg0: i32) -> (i32, i32) {
    %c0_i32 = arith.constant 0 : i32
    %c0_i32_0 = arith.constant 0 : i32
    return %arg0, %c0_i32 : i32, i32
  }
  func.func @transform_1(%arg0: i32) -> (i32, i32) {
    %c0_i32 = arith.constant 0 : i32
    %c0_i32_0 = arith.constant 0 : i32
    %c0_i32_1 = arith.constant 0 : i32
    return %c0_i32, %c0_i32_0 : i32, i32
  }
  func.func @transform_2(%arg0: i32) -> (i32, i32) {
    %c0_i32 = arith.constant 0 : i32
    %c0_i32_0 = arith.constant 0 : i32
    %c0_i32_1 = arith.constant 0 : i32
    return %c0_i32, %c0_i32_0 : i32, i32
  }
  func.func @transform_3(%arg0: i32) -> (i32, i32) {
    %c0_i32 = arith.constant 0 : i32
    %c0_i32_0 = arith.constant 0 : i32
    return %arg0, %c0_i32 : i32, i32
  }
}

</mosaic_0001>

<llo_original>
// kernel: pooling_policy_packed.1
$region0: #{pooling_policy_packed.1}
  #allocation0 [shape = 'u32[]', space=smem, size = 0x4, offset = 0x4, fixed_abs, tag = 'smem constant byte address 0x4 - core index']
  #allocation1 [shape = 'u32[144,128]{1,0:T(1,128)}', space=vmem, size = 0x12000, scoped, tag = 'internal scratch']
  %s0 = inlined_call_operand.vmem [shape: f32[2,1024], index: 0, kind: input, shape index: {}]
  %s1 = inlined_call_operand.vmem [shape: f32[1032,40], index: 1, kind: input, shape index: {}]
  %s2 = inlined_call_operand.vmem [shape: f32[48,128], index: 2, kind: input, shape index: {}]
  %s3 = inlined_call_operand.vmem [shape: f32[2,128], index: 3, kind: output, shape index: {}]
  %s4 = sld [smem:[#allocation0]]
  $region22: #{pooling_policy_packed.1} parent=0
    _
  %s6 = ssub.s32 1, %s4
  %s7 = scalar_select 0, %s6, %s4
  // Predicated region
  $region2: #{pooling_policy_packed.1} parent=0 // pred_check
    _
  $region3: #{pooling_policy_packed.1} parent=0 // pred_check_branch
    %9 = sbr.rel (0) target = $region5
  $region4: #{pooling_policy_packed.1} parent=0 // pred_region
    _
  $region5: #{pooling_policy_packed.1} parent=0 // pred_fallthru
    _
  // Predicated region
  $region6: #{pooling_policy_packed.1} parent=0 // pred_check
    _
  $region7: #{pooling_policy_packed.1} parent=0 // pred_check_branch
    %11 = sbr.rel (0) target = $region9
  $region8: #{pooling_policy_packed.1} parent=0 // pred_region
    _
  $region9: #{pooling_policy_packed.1} parent=0 // pred_fallthru
    _
  // Predicated region
  $region10: #{pooling_policy_packed.1} parent=0 // pred_check
    _
  $region11: #{pooling_policy_packed.1} parent=0 // pred_check_branch
    %13 = sbr.rel (0) target = $region13
  $region12: #{pooling_policy_packed.1} parent=0 // pred_region
    _
  $region13: #{pooling_policy_packed.1} parent=0 // pred_fallthru
    _
  %v14 = vld [vmem:[%s0] sm:$0xff]
  %v15 = vld [vmem:[%s0 + $0x8] sm:$0xff]
  %v16 = vld [vmem:[%s1] sm:$0xff]
  %v17 = vld [vmem:[%s1 + $0x8] sm:$0xff]
  %v18 = vld [vmem:[%s1 + $0x10] sm:$0xff]
  %v19 = vld [vmem:[%s1 + $0x18] sm:$0xff]
  %v20 = vld [vmem:[%s1 + $0x20] sm:$0xff]
  %v21 = vld [vmem:[%s1 + $0x28] sm:$0xff]
  %v22 = vld [vmem:[%s1 + $0x30] sm:$0xff]
  %v23 = vld [vmem:[%s1 + $0x38] sm:$0xff]
  %v24 = vld [vmem:[%s1 + $0x40] sm:$0xff]
  %v25 = vld [vmem:[%s1 + $0x48] sm:$0xff]
  %v26 = vld [vmem:[%s1 + $0x50] sm:$0xff]
  %v27 = vld [vmem:[%s1 + $0x58] sm:$0xff]
  %v28 = vld [vmem:[%s1 + $0x60] sm:$0xff]
  %v29 = vld [vmem:[%s1 + $0x68] sm:$0xff]
  %v30 = vld [vmem:[%s1 + $0x70] sm:$0xff]
  %v31 = vld [vmem:[%s1 + $0x78] sm:$0xff]
  %v32 = vld [vmem:[%s1 + $0x80] sm:$0xff]
  %v33 = vld [vmem:[%s1 + $0x88] sm:$0xff]
  %v34 = vld [vmem:[%s1 + $0x90] sm:$0xff]
  %v35 = vld [vmem:[%s1 + $0x98] sm:$0xff]
  %v36 = vld [vmem:[%s1 + $0xa0] sm:$0xff]
  %v37 = vld [vmem:[%s1 + $0xa8] sm:$0xff]
  %v38 = vld [vmem:[%s1 + $0xb0] sm:$0xff]
  %v39 = vld [vmem:[%s1 + $0xb8] sm:$0xff]
  %v40 = vld [vmem:[%s1 + $0xc0] sm:$0xff]
  %v41 = vld [vmem:[%s1 + $0xc8] sm:$0xff]
  %v42 = vld [vmem:[%s1 + $0xd0] sm:$0xff]
  %v43 = vld [vmem:[%s1 + $0xd8] sm:$0xff]
  %v44 = vld [vmem:[%s1 + $0xe0] sm:$0xff]
  %v45 = vld [vmem:[%s1 + $0xe8] sm:$0xff]
  %v46 = vld [vmem:[%s1 + $0xf0] sm:$0xff]
  %v47 = vld [vmem:[%s1 + $0xf8] sm:$0xff]
  %v48 = vld [vmem:[%s1 + $0x100] sm:$0xff]
  %v49 = vld [vmem:[%s1 + $0x108] sm:$0xff]
  %v50 = vld [vmem:[%s1 + $0x110] sm:$0xff]
  %v51 = vld [vmem:[%s1 + $0x118] sm:$0xff]
  %v52 = vld [vmem:[%s1 + $0x120] sm:$0xff]
  %v53 = vld [vmem:[%s1 + $0x128] sm:$0xff]
  %v54 = vld [vmem:[%s1 + $0x130] sm:$0xff]
  %v55 = vld [vmem:[%s1 + $0x138] sm:$0xff]
  %v56 = vld [vmem:[%s1 + $0x140] sm:$0xff]
  %v57 = vld [vmem:[%s1 + $0x148] sm:$0xff]
  %v58 = vld [vmem:[%s1 + $0x150] sm:$0xff]
  %v59 = vld [vmem:[%s1 + $0x158] sm:$0xff]
  %v60 = vld [vmem:[%s1 + $0x160] sm:$0xff]
  %v61 = vld [vmem:[%s1 + $0x168] sm:$0xff]
  %v62 = vld [vmem:[%s1 + $0x170] sm:$0xff]
  %v63 = vld [vmem:[%s1 + $0x178] sm:$0xff]
  %v64 = vld [vmem:[%s1 + $0x180] sm:$0xff]
  %v65 = vld [vmem:[%s1 + $0x188] sm:$0xff]
  %v66 = vld [vmem:[%s1 + $0x190] sm:$0xff]
  %v67 = vld [vmem:[%s1 + $0x198] sm:$0xff]
  %v68 = vld [vmem:[%s1 + $0x1a0] sm:$0xff]
  %v69 = vld [vmem:[%s1 + $0x1a8] sm:$0xff]
  %v70 = vld [vmem:[%s1 + $0x1b0] sm:$0xff]
  %v71 = vld [vmem:[%s1 + $0x1b8] sm:$0xff]
  %v72 = vld [vmem:[%s1 + $0x1c0] sm:$0xff]
  %v73 = vld [vmem:[%s1 + $0x1c8] sm:$0xff]
  %v74 = vld [vmem:[%s1 + $0x1d0] sm:$0xff]
  %v75 = vld [vmem:[%s1 + $0x1d8] sm:$0xff]
  %v76 = vld [vmem:[%s1 + $0x1e0] sm:$0xff]
  %v77 = vld [vmem:[%s1 + $0x1e8] sm:$0xff]
  %v78 = vld [vmem:[%s1 + $0x1f0] sm:$0xff]
  %v79 = vld [vmem:[%s1 + $0x1f8] sm:$0xff]
  %v80 = vld [vmem:[%s1 + $0x200] sm:$0xff]
  %v81 = vld [vmem:[%s1 + $0x208] sm:$0xff]
  %v82 = vld [vmem:[%s1 + $0x210] sm:$0xff]
  %v83 = vld [vmem:[%s1 + $0x218] sm:$0xff]
  %v84 = vld [vmem:[%s1 + $0x220] sm:$0xff]
  %v85 = vld [vmem:[%s1 + $0x228] sm:$0xff]
  %v86 = vld [vmem:[%s1 + $0x230] sm:$0xff]
  %v87 = vld [vmem:[%s1 + $0x238] sm:$0xff]
  %v88 = vld [vmem:[%s1 + $0x240] sm:$0xff]
  %v89 = vld [vmem:[%s1 + $0x248] sm:$0xff]
  %v90 = vld [vmem:[%s1 + $0x250] sm:$0xff]
  %v91 = vld [vmem:[%s1 + $0x258] sm:$0xff]
  %v92 = vld [vmem:[%s1 + $0x260] sm:$0xff]
  %v93 = vld [vmem:[%s1 + $0x268] sm:$0xff]
  %v94 = vld [vmem:[%s1 + $0x270] sm:$0xff]
  %v95 = vld [vmem:[%s1 + $0x278] sm:$0xff]
  %v96 = vld [vmem:[%s1 + $0x280] sm:$0xff]
  %v97 = vld [vmem:[%s1 + $0x288] sm:$0xff]
  %v98 = vld [vmem:[%s1 + $0x290] sm:$0xff]
  %v99 = vld [vmem:[%s1 + $0x298] sm:$0xff]
  %v100 = vld [vmem:[%s1 + $0x2a0] sm:$0xff]
  %v101 = vld [vmem:[%s1 + $0x2a8] sm:$0xff]
  %v102 = vld [vmem:[%s1 + $0x2b0] sm:$0xff]
  %v103 = vld [vmem:[%s1 + $0x2b8] sm:$0xff]
  %v104 = vld [vmem:[%s1 + $0x2c0] sm:$0xff]
  %v105 = vld [vmem:[%s1 + $0x2c8] sm:$0xff]
  %v106 = vld [vmem:[%s1 + $0x2d0] sm:$0xff]
  %v107 = vld [vmem:[%s1 + $0x2d8] sm:$0xff]
  %v108 = vld [vmem:[%s1 + $0x2e0] sm:$0xff]
  %v109 = vld [vmem:[%s1 + $0x2e8] sm:$0xff]
  %v110 = vld [vmem:[%s1 + $0x2f0] sm:$0xff]
  %v111 = vld [vmem:[%s1 + $0x2f8] sm:$0xff]
  %v112 = vld [vmem:[%s1 + $0x300] sm:$0xff]
  %v113 = vld [vmem:[%s1 + $0x308] sm:$0xff]
  %v114 = vld [vmem:[%s1 + $0x310] sm:$0xff]
  %v115 = vld [vmem:[%s1 + $0x318] sm:$0xff]
  %v116 = vld [vmem:[%s1 + $0x320] sm:$0xff]
  %v117 = vld [vmem:[%s1 + $0x328] sm:$0xff]
  %v118 = vld [vmem:[%s1 + $0x330] sm:$0xff]
  %v119 = vld [vmem:[%s1 + $0x338] sm:$0xff]
  %v120 = vld [vmem:[%s1 + $0x340] sm:$0xff]
  %v121 = vld [vmem:[%s1 + $0x348] sm:$0xff]
  %v122 = vld [vmem:[%s1 + $0x350] sm:$0xff]
  %v123 = vld [vmem:[%s1 + $0x358] sm:$0xff]
  %v124 = vld [vmem:[%s1 + $0x360] sm:$0xff]
  %v125 = vld [vmem:[%s1 + $0x368] sm:$0xff]
  %v126 = vld [vmem:[%s1 + $0x370] sm:$0xff]
  %v127 = vld [vmem:[%s1 + $0x378] sm:$0xff]
  %v128 = vld [vmem:[%s1 + $0x380] sm:$0xff]
  %v129 = vld [vmem:[%s1 + $0x388] sm:$0xff]
  %v130 = vld [vmem:[%s1 + $0x390] sm:$0xff]
  %v131 = vld [vmem:[%s1 + $0x398] sm:$0xff]
  %v132 = vld [vmem:[%s1 + $0x3a0] sm:$0xff]
  %v133 = vld [vmem:[%s1 + $0x3a8] sm:$0xff]
  %v134 = vld [vmem:[%s1 + $0x3b0] sm:$0xff]
  %v135 = vld [vmem:[%s1 + $0x3b8] sm:$0xff]
  %v136 = vld [vmem:[%s1 + $0x3c0] sm:$0xff]
  %v137 = vld [vmem:[%s1 + $0x3c8] sm:$0xff]
  %v138 = vld [vmem:[%s1 + $0x3d0] sm:$0xff]
  %v139 = vld [vmem:[%s1 + $0x3d8] sm:$0xff]
  %v140 = vld [vmem:[%s1 + $0x3e0] sm:$0xff]
  %v141 = vld [vmem:[%s1 + $0x3e8] sm:$0xff]
  %v142 = vld [vmem:[%s1 + $0x3f0] sm:$0xff]
  %v143 = vld [vmem:[%s1 + $0x3f8] sm:$0xff]
  %v144 = vld [vmem:[%s1 + $0x400] sm:$0x1]
  %v145 = vlaneseq
  %v146 = vshrl.u32 %v145, 7
  %v147 = vsub.s32 0, %v146
  %v148 = vrot.slane %v144, %v147
  %v151 = vcombine.high %v14, %v14
  %v153 = vunpack.c.l.s4 1983009808
  %v154 = vunpack.c.0.s8 %v153
  %v155 = vlaneseq
  %v156 = vshrl.u32 %v155, 7
  %v157 = vsub.s32 %v154, %v156
  %v158 = vrot.slane %v14, %v157
  %v160 = vunpack.c.l.s4 1983009808
  %v161 = vunpack.c.0.s8 %v160
  %v162 = vlaneseq
  %v163 = vshrl.u32 %v162, 7
  %v164 = vsub.s32 %v161, %v163
  %v165 = vrot.slane %v151, %v164
  %v166 = vcombine.high %v158, %v158
  %v167 = vcombine.high %v165, %v165
  %v168 = vcombine.high %v15, %v15
  %v170 = vunpack.c.l.s4 1983009808
  %v171 = vunpack.c.0.s8 %v170
  %v172 = vlaneseq
  %v173 = vshrl.u32 %v172, 7
  %v174 = vsub.s32 %v171, %v173
  %v175 = vrot.slane %v15, %v174
  %v177 = vunpack.c.l.s4 1983009808
  %v178 = vunpack.c.0.s8 %v177
  %v179 = vlaneseq
  %v180 = vshrl.u32 %v179, 7
  %v181 = vsub.s32 %v178, %v180
  %v182 = vrot.slane %v168, %v181
  %v183 = vcombine.high %v175, %v175
  %v184 = vcombine.high %v182, %v182
  %193 = vmatprep.subr.mxu0 0.0
  %194 = vmatpush1.msra.mxu0 %v31
  %195 = vmatprep.subr.mxu0 0.0
  %196 = vmatpush1.msra.mxu0 %v30
  %197 = vmatprep.subr.mxu0 0.0
  %198 = vmatpush1.msra.mxu0 %v29
  %199 = vmatprep.subr.mxu0 0.0
  %200 = vmatpush1.msra.mxu0 %v28
  %201 = vmatprep.subr.mxu0 0.0
  %202 = vmatpush1.msra.mxu0 %v27
  %203 = vmatprep.subr.mxu0 0.0
  %204 = vmatpush1.msra.mxu0 %v26
  %205 = vmatprep.subr.mxu0 0.0
  %206 = vmatpush1.msra.mxu0 %v25
  %207 = vmatprep.subr.mxu0 0.0
  %208 = vmatpush1.msra.mxu0 %v24
  %209 = vmatprep.subr.mxu0 0.0
  %210 = vmatpush1.msra.mxu0 %v23
  %211 = vmatprep.subr.mxu0 0.0
  %212 = vmatpush1.msra.mxu0 %v22
  %213 = vmatprep.subr.mxu0 0.0
  %214 = vmatpush1.msra.mxu0 %v21
  %215 = vmatprep.subr.mxu0 0.0
  %216 = vmatpush1.msra.mxu0 %v20
  %217 = vmatprep.subr.mxu0 0.0
  %218 = vmatpush1.msra.mxu0 %v19
  %219 = vmatprep.subr.mxu0 0.0
  %220 = vmatpush1.msra.mxu0 %v18
  %221 = vmatprep.subr.mxu0 0.0
  %222 = vmatpush1.msra.mxu0 %v17
  %223 = vmatprep.subr.mxu0 0.0
  %224 = vmatpush1.msra.mxu0 %v16
  %225 = vmatprep.subr.mxu0 0.0
  %226 = vmatpush2.msra.mxu0 %v47
  %227 = vmatprep.subr.mxu0 0.0
  %228 = vmatpush2.msra.mxu0 %v46
  %229 = vmatprep.subr.mxu0 0.0
  %230 = vmatpush2.msra.mxu0 %v45
  %231 = vmatprep.subr.mxu0 0.0
  %232 = vmatpush2.msra.mxu0 %v44
  %233 = vmatprep.subr.mxu0 0.0
  %234 = vmatpush2.msra.mxu0 %v43
  %235 = vmatprep.subr.mxu0 0.0
  %236 = vmatpush2.msra.mxu0 %v42
  %237 = vmatprep.subr.mxu0 0.0
  %238 = vmatpush2.msra.mxu0 %v41
  %239 = vmatprep.subr.mxu0 0.0
  %240 = vmatpush2.msra.mxu0 %v40
  %241 = vmatprep.subr.mxu0 0.0
  %242 = vmatpush2.msra.mxu0 %v39
  %243 = vmatprep.subr.mxu0 0.0
  %244 = vmatpush2.msra.mxu0 %v38
  %245 = vmatprep.subr.mxu0 0.0
  %246 = vmatpush2.msra.mxu0 %v37
  %247 = vmatprep.subr.mxu0 0.0
  %248 = vmatpush2.msra.mxu0 %v36
  %249 = vmatprep.subr.mxu0 0.0
  %250 = vmatpush2.msra.mxu0 %v35
  %251 = vmatprep.subr.mxu0 0.0
  %252 = vmatpush2.msra.mxu0 %v34
  %253 = vmatprep.subr.mxu0 0.0
  %254 = vmatpush2.msra.mxu0 %v33
  %255 = vmatprep.subr.mxu0 0.0
  %256 = vmatpush2.msra.mxu0 %v32
  %257 = vmatprep.mubr.f32.mxu0 %v166
  %258 = vmatmul.mubr.f32.gmra.mxu0 %v158
  %v259 = vpop.f32.mrf.mxu0
  %v260 = vadd.f32 %v148, %v259
  %v261 = vpop.f32.mrf.mxu0
  %262 = vdwg.mxu0
  %263 = vmatprep.subr.mxu0 0.0
  %264 = vmatpush1.msra.mxu0 %v63
  %265 = vmatprep.subr.mxu0 0.0
  %266 = vmatpush1.msra.mxu0 %v62
  %267 = vmatprep.subr.mxu0 0.0
  %268 = vmatpush1.msra.mxu0 %v61
  %269 = vmatprep.subr.mxu0 0.0
  %270 = vmatpush1.msra.mxu0 %v60
  %271 = vmatprep.subr.mxu0 0.0
  %272 = vmatpush1.msra.mxu0 %v59
  %273 = vmatprep.subr.mxu0 0.0
  %274 = vmatpush1.msra.mxu0 %v58
  %275 = vmatprep.subr.mxu0 0.0
  %276 = vmatpush1.msra.mxu0 %v57
  %277 = vmatprep.subr.mxu0 0.0
  %278 = vmatpush1.msra.mxu0 %v56
  %279 = vmatprep.subr.mxu0 0.0
  %280 = vmatpush1.msra.mxu0 %v55
  %281 = vmatprep.subr.mxu0 0.0
  %282 = vmatpush1.msra.mxu0 %v54
  %283 = vmatprep.subr.mxu0 0.0
  %284 = vmatpush1.msra.mxu0 %v53
  %285 = vmatprep.subr.mxu0 0.0
  %286 = vmatpush1.msra.mxu0 %v52
  %287 = vmatprep.subr.mxu0 0.0
  %288 = vmatpush1.msra.mxu0 %v51
  %289 = vmatprep.subr.mxu0 0.0
  %290 = vmatpush1.msra.mxu0 %v50
  %291 = vmatprep.subr.mxu0 0.0
  %292 = vmatpush1.msra.mxu0 %v49
  %293 = vmatprep.subr.mxu0 0.0
  %294 = vmatpush1.msra.mxu0 %v48
  %295 = vmatprep.subr.mxu0 0.0
  %296 = vmatpush2.msra.mxu0 %v79
  %297 = vmatprep.subr.mxu0 0.0
  %298 = vmatpush2.msra.mxu0 %v78
  %299 = vmatprep.subr.mxu0 0.0
  %300 = vmatpush2.msra.mxu0 %v77
  %301 = vmatprep.subr.mxu0 0.0
  %302 = vmatpush2.msra.mxu0 %v76
  %303 = vmatprep.subr.mxu0 0.0
  %304 = vmatpush2.msra.mxu0 %v75
  %305 = vmatprep.subr.mxu0 0.0
  %306 = vmatpush2.msra.mxu0 %v74
  %307 = vmatprep.subr.mxu0 0.0
  %308 = vmatpush2.msra.mxu0 %v73
  %309 = vmatprep.subr.mxu0 0.0
  %310 = vmatpush2.msra.mxu0 %v72
  %311 = vmatprep.subr.mxu0 0.0
  %312 = vmatpush2.msra.mxu0 %v71
  %313 = vmatprep.subr.mxu0 0.0
  %314 = vmatpush2.msra.mxu0 %v70
  %315 = vmatprep.subr.mxu0 0.0
  %316 = vmatpush2.msra.mxu0 %v69
  %317 = vmatprep.subr.mxu0 0.0
  %318 = vmatpush2.msra.mxu0 %v68
  %319 = vmatprep.subr.mxu0 0.0
  %320 = vmatpush2.msra.mxu0 %v67
  %321 = vmatprep.subr.mxu0 0.0
  %322 = vmatpush2.msra.mxu0 %v66
  %323 = vmatprep.subr.mxu0 0.0
  %324 = vmatpush2.msra.mxu0 %v65
  %325 = vmatprep.subr.mxu0 0.0
  %326 = vmatpush2.msra.mxu0 %v64
  %327 = vmatprep.mubr.f32.mxu0 %v167
  %328 = vmatmul.mubr.f32.gmra.mxu0 %v165
  %v329 = vpop.f32.mrf.mxu0
  %v330 = vadd.f32 %v260, %v329
  %v331 = vpop.f32.mrf.mxu0
  %332 = vdwg.mxu0
  %333 = vmatprep.subr.mxu0 0.0
  %334 = vmatpush1.msra.mxu0 %v95
  %335 = vmatprep.subr.mxu0 0.0
  %336 = vmatpush1.msra.mxu0 %v94
  %337 = vmatprep.subr.mxu0 0.0
  %338 = vmatpush1.msra.mxu0 %v93
  %339 = vmatprep.subr.mxu0 0.0
  %340 = vmatpush1.msra.mxu0 %v92
  %341 = vmatprep.subr.mxu0 0.0
  %342 = vmatpush1.msra.mxu0 %v91
  %343 = vmatprep.subr.mxu0 0.0
  %344 = vmatpush1.msra.mxu0 %v90
  %345 = vmatprep.subr.mxu0 0.0
  %346 = vmatpush1.msra.mxu0 %v89
  %347 = vmatprep.subr.mxu0 0.0
  %348 = vmatpush1.msra.mxu0 %v88
  %349 = vmatprep.subr.mxu0 0.0
  %350 = vmatpush1.msra.mxu0 %v87
  %351 = vmatprep.subr.mxu0 0.0
  %352 = vmatpush1.msra.mxu0 %v86
  %353 = vmatprep.subr.mxu0 0.0
  %354 = vmatpush1.msra.mxu0 %v85
  %355 = vmatprep.subr.mxu0 0.0
  %356 = vmatpush1.msra.mxu0 %v84
  %357 = vmatprep.subr.mxu0 0.0
  %358 = vmatpush1.msra.mxu0 %v83
  %359 = vmatprep.subr.mxu0 0.0
  %360 = vmatpush1.msra.mxu0 %v82
  %361 = vmatprep.subr.mxu0 0.0
  %362 = vmatpush1.msra.mxu0 %v81
  %363 = vmatprep.subr.mxu0 0.0
  %364 = vmatpush1.msra.mxu0 %v80
  %365 = vmatprep.subr.mxu0 0.0
  %366 = vmatpush2.msra.mxu0 %v111
  %367 = vmatprep.subr.mxu0 0.0
  %368 = vmatpush2.msra.mxu0 %v110
  %369 = vmatprep.subr.mxu0 0.0
  %370 = vmatpush2.msra.mxu0 %v109
  %371 = vmatprep.subr.mxu0 0.0
  %372 = vmatpush2.msra.mxu0 %v108
  %373 = vmatprep.subr.mxu0 0.0
  %374 = vmatpush2.msra.mxu0 %v107
  %375 = vmatprep.subr.mxu0 0.0
  %376 = vmatpush2.msra.mxu0 %v106
  %377 = vmatprep.subr.mxu0 0.0
  %378 = vmatpush2.msra.mxu0 %v105
  %379 = vmatprep.subr.mxu0 0.0
  %380 = vmatpush2.msra.mxu0 %v104
  %381 = vmatprep.subr.mxu0 0.0
  %382 = vmatpush2.msra.mxu0 %v103
  %383 = vmatprep.subr.mxu0 0.0
  %384 = vmatpush2.msra.mxu0 %v102
  %385 = vmatprep.subr.mxu0 0.0
  %386 = vmatpush2.msra.mxu0 %v101
  %387 = vmatprep.subr.mxu0 0.0
  %388 = vmatpush2.msra.mxu0 %v100
  %389 = vmatprep.subr.mxu0 0.0
  %390 = vmatpush2.msra.mxu0 %v99
  %391 = vmatprep.subr.mxu0 0.0
  %392 = vmatpush2.msra.mxu0 %v98
  %393 = vmatprep.subr.mxu0 0.0
  %394 = vmatpush2.msra.mxu0 %v97
  %395 = vmatprep.subr.mxu0 0.0
  %396 = vmatpush2.msra.mxu0 %v96
  %397 = vmatprep.mubr.f32.mxu0 %v183
  %398 = vmatmul.mubr.f32.gmra.mxu0 %v175
  %v399 = vpop.f32.mrf.mxu0
  %v400 = vadd.f32 %v330, %v399
  %v401 = vpop.f32.mrf.mxu0
  %402 = vdwg.mxu0
  %403 = vmatprep.subr.mxu0 0.0
  %404 = vmatpush1.msra.mxu0 %v127
  %405 = vmatprep.subr.mxu0 0.0
  %406 = vmatpush1.msra.mxu0 %v126
  %407 = vmatprep.subr.mxu0 0.0
  %408 = vmatpush1.msra.mxu0 %v125
  %409 = vmatprep.subr.mxu0 0.0
  %410 = vmatpush1.msra.mxu0 %v124
  %411 = vmatprep.subr.mxu0 0.0
  %412 = vmatpush1.msra.mxu0 %v123
  %413 = vmatprep.subr.mxu0 0.0
  %414 = vmatpush1.msra.mxu0 %v122
  %415 = vmatprep.subr.mxu0 0.0
  %416 = vmatpush1.msra.mxu0 %v121
  %417 = vmatprep.subr.mxu0 0.0
  %418 = vmatpush1.msra.mxu0 %v120
  %419 = vmatprep.subr.mxu0 0.0
  %420 = vmatpush1.msra.mxu0 %v119
  %421 = vmatprep.subr.mxu0 0.0
  %422 = vmatpush1.msra.mxu0 %v118
  %423 = vmatprep.subr.mxu0 0.0
  %424 = vmatpush1.msra.mxu0 %v117
  %425 = vmatprep.subr.mxu0 0.0
  %426 = vmatpush1.msra.mxu0 %v116
  %427 = vmatprep.subr.mxu0 0.0
  %428 = vmatpush1.msra.mxu0 %v115
  %429 = vmatprep.subr.mxu0 0.0
  %430 = vmatpush1.msra.mxu0 %v114
  %431 = vmatprep.subr.mxu0 0.0
  %432 = vmatpush1.msra.mxu0 %v113
  %433 = vmatprep.subr.mxu0 0.0
  %434 = vmatpush1.msra.mxu0 %v112
  %435 = vmatprep.subr.mxu0 0.0
  %436 = vmatpush2.msra.mxu0 %v143
  %437 = vmatprep.subr.mxu0 0.0
  %438 = vmatpush2.msra.mxu0 %v142
  %439 = vmatprep.subr.mxu0 0.0
  %440 = vmatpush2.msra.mxu0 %v141
  %441 = vmatprep.subr.mxu0 0.0
  %442 = vmatpush2.msra.mxu0 %v140
  %443 = vmatprep.subr.mxu0 0.0
  %444 = vmatpush2.msra.mxu0 %v139
  %445 = vmatprep.subr.mxu0 0.0
  %446 = vmatpush2.msra.mxu0 %v138
  %447 = vmatprep.subr.mxu0 0.0
  %448 = vmatpush2.msra.mxu0 %v137
  %449 = vmatprep.subr.mxu0 0.0
  %450 = vmatpush2.msra.mxu0 %v136
  %451 = vmatprep.subr.mxu0 0.0
  %452 = vmatpush2.msra.mxu0 %v135
  %453 = vmatprep.subr.mxu0 0.0
  %454 = vmatpush2.msra.mxu0 %v134
  %455 = vmatprep.subr.mxu0 0.0
  %456 = vmatpush2.msra.mxu0 %v133
  %457 = vmatprep.subr.mxu0 0.0
  %458 = vmatpush2.msra.mxu0 %v132
  %459 = vmatprep.subr.mxu0 0.0
  %460 = vmatpush2.msra.mxu0 %v131
  %461 = vmatprep.subr.mxu0 0.0
  %462 = vmatpush2.msra.mxu0 %v130
  %463 = vmatprep.subr.mxu0 0.0
  %464 = vmatpush2.msra.mxu0 %v129
  %465 = vmatprep.subr.mxu0 0.0
  %466 = vmatpush2.msra.mxu0 %v128
  %467 = vmatprep.mubr.f32.mxu0 %v184
  %468 = vmatmul.mubr.f32.gmra.mxu0 %v182
  %v469 = vpop.f32.mrf.mxu0
  %v470 = vadd.f32 %v400, %v469
  %v471 = vpop.f32.mrf.mxu0
  %472 = vdwg.mxu0
  %v473 = vmax.f32 %v470, 0.0
  %v474 = vld [vmem:[%s2] sm:$0xff]
  %v475 = vld [vmem:[%s2 + $0x8] sm:$0xff]
  %v476 = vld [vmem:[%s2 + $0x10] sm:$0xff]
  %v477 = vld [vmem:[%s2 + $0x18] sm:$0xff]
  %v478 = vld [vmem:[%s2 + $0x20] sm:$0xff]
  %v479 = vld [vmem:[%s2 + $0x28] sm:$0x1]
  %v480 = vlaneseq
  %v481 = vshrl.u32 %v480, 7
  %v482 = vsub.s32 0, %v481
  %v483 = vrot.slane %v479, %v482
  %vm484 = vcmask 326656
  %v486 = vsel %vm484, %v473, 0
  %488 = vmatprep.subr.mxu0 0.0
  %489 = vmatpush1.msra.mxu0 0.0
  %490 = vmatprep.subr.mxu0 0.0
  %491 = vmatpush1.msra.mxu0 0.0
  %492 = vmatprep.subr.mxu0 0.0
  %493 = vmatpush1.msra.mxu0 0.0
  %494 = vmatprep.subr.mxu0 0.0
  %495 = vmatpush1.msra.mxu0 0.0
  %496 = vmatprep.subr.mxu0 0.0
  %497 = vmatpush1.msra.mxu0 0.0
  %498 = vmatprep.subr.mxu0 0.0
  %499 = vmatpush1.msra.mxu0 0.0
  %500 = vmatprep.subr.mxu0 0.0
  %501 = vmatpush1.msra.mxu0 0.0
  %502 = vmatprep.subr.mxu0 0.0
  %503 = vmatpush1.msra.mxu0 0.0
  %504 = vmatprep.subr.mxu0 0.0
  %505 = vmatpush1.msra.mxu0 0.0
  %506 = vmatprep.subr.mxu0 0.0
  %507 = vmatpush1.msra.mxu0 0.0
  %508 = vmatprep.subr.mxu0 0.0
  %509 = vmatpush1.msra.mxu0 0.0
  %510 = vmatprep.subr.mxu0 0.0
  %511 = vmatpush1.msra.mxu0 %v478
  %512 = vmatprep.subr.mxu0 0.0
  %513 = vmatpush1.msra.mxu0 %v477
  %514 = vmatprep.subr.mxu0 0.0
  %515 = vmatpush1.msra.mxu0 %v476
  %516 = vmatprep.subr.mxu0 0.0
  %517 = vmatpush1.msra.mxu0 %v475
  %518 = vmatprep.subr.mxu0 0.0
  %519 = vmatpush1.msra.mxu0 %v474
  %520 = vmatprep.subr.mxu0 0.0
  %521 = vmatpush2.msra.mxu0 0.0
  %522 = vmatprep.subr.mxu0 0.0
  %523 = vmatpush2.msra.mxu0 0.0
  %524 = vmatprep.subr.mxu0 0.0
  %525 = vmatpush2.msra.mxu0 0.0
  %526 = vmatprep.subr.mxu0 0.0
  %527 = vmatpush2.msra.mxu0 0.0
  %528 = vmatprep.subr.mxu0 0.0
  %529 = vmatpush2.msra.mxu0 0.0
  %530 = vmatprep.subr.mxu0 0.0
  %531 = vmatpush2.msra.mxu0 0.0
  %532 = vmatprep.subr.mxu0 0.0
  %533 = vmatpush2.msra.mxu0 0.0
  %534 = vmatprep.subr.mxu0 0.0
  %535 = vmatpush2.msra.mxu0 0.0
  %536 = vmatprep.subr.mxu0 0.0
  %537 = vmatpush2.msra.mxu0 0.0
  %538 = vmatprep.subr.mxu0 0.0
  %539 = vmatpush2.msra.mxu0 0.0
  %540 = vmatprep.subr.mxu0 0.0
  %541 = vmatpush2.msra.mxu0 0.0
  %542 = vmatprep.subr.mxu0 0.0
  %543 = vmatpush2.msra.mxu0 0.0
  %544 = vmatprep.subr.mxu0 0.0
  %545 = vmatpush2.msra.mxu0 0.0
  %546 = vmatprep.subr.mxu0 0.0
  %547 = vmatpush2.msra.mxu0 0.0
  %548 = vmatprep.subr.mxu0 0.0
  %549 = vmatpush2.msra.mxu0 0.0
  %550 = vmatprep.subr.mxu0 0.0
  %551 = vmatpush2.msra.mxu0 0.0
  %552 = vmatprep.mubr.f32.mxu0 0.0
  %553 = vmatmul.mubr.f32.gmra.mxu0 %v486
  %v554 = vpop.f32.mrf.mxu0
  %v555 = vadd.f32 %v483, %v554
  %v556 = vpop.f32.mrf.mxu0
  %557 = vdwg.mxu0
  %558 = vst [vmem:[%s3] sm:$0x3] %v555
  // Predicated region
  $region14: #{pooling_policy_packed.1} parent=0 // pred_check
    _
  $region15: #{pooling_policy_packed.1} parent=0 // pred_check_branch
    %560 = sbr.rel (0) target = $region17
  $region16: #{pooling_policy_packed.1} parent=0 // pred_region
    _
  $region17: #{pooling_policy_packed.1} parent=0 // pred_fallthru
    _
  // Predicated region
  $region18: #{pooling_policy_packed.1} parent=0 // pred_check
    _
  $region19: #{pooling_policy_packed.1} parent=0 // pred_check_branch
    %562 = sbr.rel (0) target = $region21
  $region20: #{pooling_policy_packed.1} parent=0 // pred_region
    _
  $region21: #{pooling_policy_packed.1} parent=0 // pred_fallthru
    _

</llo_original>
